<compile_context>
chip_gen: v7x
topology: tpu7x:2x2x1
jax: 0.10.0
libtpu: 0.0.40
codegen_flags: <defaults>
</compile_context>

<pallas_src>
import functools
import math

import jax
import jax.numpy as jnp
from jax import lax
from jax.experimental import pallas as pl
from jax.experimental.pallas import tpu as pltpu


# -----------------------------------------------------------------------------
# Kernel 1: batch-independent GCN graph branch
#   g = adj @ (LeakyReLU(adj @ (inp @ W1)) @ W2), emitted in bf16.
# -----------------------------------------------------------------------------
def _gcn_graph_kernel(inp_ref, adj_ref, w1_ref, w2_ref, g_ref, *, neg_slope):
    inp = inp_ref[...].astype(jnp.bfloat16)
    adj = adj_ref[...].astype(jnp.bfloat16)

    # gc1: adj @ (inp @ W1)  -- bf16 MXU operands, f32 accumulation.
    s1 = jnp.dot(inp, w1_ref[...].astype(jnp.bfloat16),
                 preferred_element_type=jnp.float32)
    x1 = jnp.dot(adj, s1.astype(jnp.bfloat16),
                 preferred_element_type=jnp.float32)
    # LeakyReLU(0.2): single select+mul, kept in f32 (v5e has no bf16 VALU).
    x1 = jnp.where(x1 > 0, x1, neg_slope * x1)

    # gc2: adj @ (x1 @ W2)
    s2 = jnp.dot(x1.astype(jnp.bfloat16), w2_ref[...].astype(jnp.bfloat16),
                 preferred_element_type=jnp.float32)
    x2 = jnp.dot(adj, s2.astype(jnp.bfloat16),
                 preferred_element_type=jnp.float32)

    g_ref[...] = x2.astype(g_ref.dtype)


def gcn_graph(inp_pad, adj_pad, w1, w2, neg_slope=0.2):
    """(Npad,Dw),(Npad,Npad),(Dw,Dh),(Dh,Do) -> bf16 (Npad, Do) classifier matrix."""
    npad = inp_pad.shape[0]
    do = w2.shape[1]
    vmem = pl.BlockSpec(memory_space=pltpu.MemorySpace.VMEM)
    kernel = functools.partial(_gcn_graph_kernel, neg_slope=neg_slope)
    return pl.pallas_call(
        kernel,
        out_shape=jax.ShapeDtypeStruct((npad, do), jnp.bfloat16),
        in_specs=[vmem] * 4,
        out_specs=vmem,
    )(inp_pad, adj_pad, w1, w2)


# -----------------------------------------------------------------------------
# Kernel 2: fused global max-pool + classification matmul, tiled over batch.
#   o[b, :] = max_s(x[b, s, :]) @ g.T     (contraction on the channel axis)
# -----------------------------------------------------------------------------
def _pool_logits_kernel(x_ref, g_ref, o_ref):
    # x_ref: (TB, S, C) f32 ; g_ref: (Npad, C) bf16 ; o_ref: (TB, Npad) f32
    pooled = jnp.max(x_ref[...], axis=1)                  # (TB, C), XLU reduce
    feat = pooled.astype(jnp.bfloat16)                     # cast only at MXU boundary
    # Contract the last dim of both operands: no in-kernel transpose of g.
    o_ref[...] = lax.dot_general(
        feat, g_ref[...],
        dimension_numbers=(((1,), (1,)), ((), ())),
        preferred_element_type=jnp.float32).astype(o_ref.dtype)


def pool_logits(fmap_bsc, g):
    """(B, S, C) feature map + (Npad, C) bf16 classifier -> (B, Npad) f32 logits."""
    B, S, C = fmap_bsc.shape
    npad, do = g.shape
    assert do == C, "gcn output dim must equal image feature dim"

    # Batch tile: 8 rows when possible (sublane-aligned, amortizes grid-step
    # overhead); partial edge blocks are handled by Pallas (masked writeback).
    TB = B if B < 8 else 8
    grid = (pl.cdiv(B, TB),)

    # Explicit VMEM budget: double-buffered feature tile + resident g + output,
    # capped below v7x's 64 MiB physical VMEM.
    vmem_bytes = (2 * TB * S * C * fmap_bsc.dtype.itemsize
                  + npad * do * 2 + 2 * TB * npad * 4 + (4 << 20))
    vmem_limit = int(min(60 * 1024 * 1024, max(16 * 1024 * 1024, vmem_bytes)))

    return pl.pallas_call(
        _pool_logits_kernel,
        out_shape=jax.ShapeDtypeStruct((B, npad), jnp.float32),
        grid=grid,
        in_specs=[
            pl.BlockSpec((TB, S, C), lambda b: (b, 0, 0)),
            pl.BlockSpec((npad, do), lambda b: (0, 0)),   # constant block -> fetched once
        ],
        out_specs=pl.BlockSpec((TB, npad), lambda b: (b, 0)),
        compiler_params=pltpu.CompilerParams(
            dimension_semantics=("parallel",),            # shards batch across TCs on v7x
            vmem_limit_bytes=vmem_limit,
        ),
    )(fmap_bsc, g)


# -----------------------------------------------------------------------------
# Full forward: backbone feature map -> logits
# -----------------------------------------------------------------------------
def mlgcn_forward(fmap_nchw, word_features, adj, w1, w2):
    B, C, H, W = fmap_nchw.shape
    N, Dw = word_features.shape
    Do = w2.shape[1]
    assert Do == C, "feature @ g.T requires matching feature dims"

    # layout: NCHW -> (B, S=H*W, C) so channels ride the lane axis.
    fmap_bsc = jnp.transpose(fmap_nchw, (0, 2, 3, 1)).reshape(B, H * W, C)

    # Pad the node axis to a multiple of 128 with zeros: padded rows of g come
    # out exactly zero (zero word features + zero adjacency rows), the logits
    # output is lane-dense, and the real classes are sliced back at the end.
    Npad = 128 * pl.cdiv(N, 128)
    inp_pad = jnp.zeros((Npad, Dw), jnp.float32).at[:N, :].set(word_features)
    adj_pad = jnp.zeros((Npad, Npad), jnp.float32).at[:N, :N].set(adj)

    g = gcn_graph(inp_pad, adj_pad, w1, w2)      # (Npad, Do) bf16, batch-independent
    logits_pad = pool_logits(fmap_bsc, g)         # (B, Npad) f32
    return logits_pad[:, :N]


# -----------------------------------------------------------------------------
# Parameter / adjacency setup (plain JAX glue, mirrors gen_A / gen_adj)
# -----------------------------------------------------------------------------
def gen_A_synthetic(num_classes, t, key):
    # TODO(synk): the original gen_A loads co-occurrence stats from a pickle
    # file; a deterministic synthetic (adj, nums) pair feeds the same math here.
    k1, k2 = jax.random.split(key)
    _adj = jax.random.uniform(k1, (num_classes, num_classes), jnp.float32)
    _nums = jax.random.uniform(k2, (num_classes,), jnp.float32,
                               minval=1.0, maxval=10.0)[:, None]
    _adj = _adj / _nums
    _adj = jnp.where(_adj < t, 0.0, 1.0)
    _adj = _adj * 0.25 / (_adj.sum(0, keepdims=True) + 1e-6)
    _adj = _adj + jnp.eye(num_classes, dtype=jnp.float32)
    return _adj


def gen_adj(A):
    # Row sums >= 1 because A includes the identity, so the -0.5 power is finite.
    D = jnp.power(A.sum(1), -0.5)
    D = jnp.diag(D)
    return jnp.matmul(jnp.matmul(A, D).T, D)


# -----------------------------------------------------------------------------
if __name__ == "__main__":
    key = jax.random.PRNGKey(0)
    keys = jax.random.split(key, 5)

    # Small, structure-preserving dims.
    B = 2
    num_classes = 16          # (module: 80)
    word_feature_dim = 32     # (module: 300)
    gcn_hidden_dim = 64       # (module: 1024)
    gcn_output_dim = 128      # (module: 2048)
    image_feature_dim = 128   # == gcn_output_dim (ResNet layer4 channel count)
    H = W = 8

    # TODO(synk): the ResNet backbone (self.features) is an external pretrained
    # model; the kernels consume the backbone's output feature map directly.
    fmap_nchw = jax.random.normal(
        keys[0], (B, image_feature_dim, H, W), jnp.float32)

    # TODO(synk): word features are GloVe embeddings loaded from a pickle in
    # the module; a deterministic synthetic tensor stands in here.
    word_features = jax.random.normal(
        keys[1], (num_classes, word_feature_dim), jnp.float32)

    # GraphConvolution weights: uniform(-stdv, stdv), stdv = 1/sqrt(out_features)
    stdv1 = 1.0 / math.sqrt(gcn_hidden_dim)
    w1 = jax.random.uniform(keys[2], (word_feature_dim, gcn_hidden_dim),
                            jnp.float32, minval=-stdv1, maxval=stdv1)
    stdv2 = 1.0 / math.sqrt(gcn_output_dim)
    w2 = jax.random.uniform(keys[3], (gcn_hidden_dim, gcn_output_dim),
                            jnp.float32, minval=-stdv2, maxval=stdv2)

    # Adjacency (gen_A + gen_adj)
    A = gen_A_synthetic(num_classes, t=0.4, key=keys[4])
    adj = gen_adj(A).astype(jnp.float32)

    logits = mlgcn_forward(fmap_nchw, word_features, adj, w1, w2)
    jax.block_until_ready(logits)

    assert logits.shape == (B, num_classes)
    assert logits.dtype == jnp.float32
    assert bool(jnp.all(jnp.isfinite(logits)))
    print("KERNEL_OK")
</pallas_src>

<mosaic_0001>
module attributes {stable_mosaic.version = 11 : i64} {
  func.func @_gcn_graph_kernel(%arg0: memref<128x32xf32, #tpu.memory_space<vmem>>, %arg1: memref<128x128xf32, #tpu.memory_space<vmem>>, %arg2: memref<32x64xf32, #tpu.memory_space<vmem>>, %arg3: memref<64x128xf32, #tpu.memory_space<vmem>>, %arg4: memref<128x128xbf16, #tpu.memory_space<vmem>>) attributes {dimension_semantics = [], scalar_prefetch = 0 : i64, scratch_operands = 0 : i64, tpu.core_type = #tpu.core_type<tc>} {
    %c0 = arith.constant 0 : index
    %c0_0 = arith.constant 0 : index
    %0 = vector.load %arg0[%c0, %c0_0] : memref<128x32xf32, #tpu.memory_space<vmem>>, vector<128x32xf32>
    %1 = arith.truncf %0 : vector<128x32xf32> to vector<128x32xbf16>
    %c0_1 = arith.constant 0 : index
    %c0_2 = arith.constant 0 : index
    %2 = vector.load %arg1[%c0_1, %c0_2] : memref<128x128xf32, #tpu.memory_space<vmem>>, vector<128x128xf32>
    %3 = arith.truncf %2 : vector<128x128xf32> to vector<128x128xbf16>
    %c0_3 = arith.constant 0 : index
    %c0_4 = arith.constant 0 : index
    %4 = vector.load %arg2[%c0_3, %c0_4] : memref<32x64xf32, #tpu.memory_space<vmem>>, vector<32x64xf32>
    %5 = arith.truncf %4 : vector<32x64xf32> to vector<32x64xbf16>
    %cst = arith.constant dense<0.000000e+00> : vector<128x64xf32>
    %6 = tpu.matmul %1, %5, %cst {dimension_numbers = #tpu.dot_dimension_numbers<[1], [0], [0], [1], [0, 0, 1, 1], [], []>} : vector<128x32xbf16>, vector<32x64xbf16>, vector<128x64xf32> -> vector<128x64xf32>
    %7 = arith.truncf %6 : vector<128x64xf32> to vector<128x64xbf16>
    %cst_5 = arith.constant dense<0.000000e+00> : vector<128x64xf32>
    %8 = tpu.matmul %3, %7, %cst_5 {dimension_numbers = #tpu.dot_dimension_numbers<[1], [0], [0], [1], [0, 0, 1, 1], [], []>} : vector<128x128xbf16>, vector<128x64xbf16>, vector<128x64xf32> -> vector<128x64xf32>
    %cst_6 = arith.constant 0.000000e+00 : f32
    %9 = vector.broadcast %cst_6 : f32 to vector<128x64xf32>
    %10 = arith.cmpf ogt, %8, %9 : vector<128x64xf32>
    %cst_7 = arith.constant 2.000000e-01 : f32
    %11 = vector.broadcast %cst_7 : f32 to vector<128x64xf32>
    %12 = arith.mulf %11, %8 : vector<128x64xf32>
    %13 = arith.select %10, %8, %12 : vector<128x64xi1>, vector<128x64xf32>
    %14 = arith.truncf %13 : vector<128x64xf32> to vector<128x64xbf16>
    %c0_8 = arith.constant 0 : index
    %c0_9 = arith.constant 0 : index
    %15 = vector.load %arg3[%c0_8, %c0_9] : memref<64x128xf32, #tpu.memory_space<vmem>>, vector<64x128xf32>
    %16 = arith.truncf %15 : vector<64x128xf32> to vector<64x128xbf16>
    %cst_10 = arith.constant dense<0.000000e+00> : vector<128x128xf32>
    %17 = tpu.matmul %14, %16, %cst_10 {dimension_numbers = #tpu.dot_dimension_numbers<[1], [0], [0], [1], [0, 0, 1, 1], [], []>} : vector<128x64xbf16>, vector<64x128xbf16>, vector<128x128xf32> -> vector<128x128xf32>
    %18 = arith.truncf %17 : vector<128x128xf32> to vector<128x128xbf16>
    %cst_11 = arith.constant dense<0.000000e+00> : vector<128x128xf32>
    %19 = tpu.matmul %3, %18, %cst_11 {dimension_numbers = #tpu.dot_dimension_numbers<[1], [0], [0], [1], [0, 0, 1, 1], [], []>} : vector<128x128xbf16>, vector<128x128xbf16>, vector<128x128xf32> -> vector<128x128xf32>
    %20 = arith.truncf %19 : vector<128x128xf32> to vector<128x128xbf16>
    %c0_12 = arith.constant 0 : index
    %c0_13 = arith.constant 0 : index
    %21 = vector.load %arg4[%c0_12, %c0_13] : memref<128x128xbf16, #tpu.memory_space<vmem>>, vector<128x128xbf16>
    tpu.vector_store %arg4[%c0_12, %c0_13], %20 {strides = array<i32>} : memref<128x128xbf16, #tpu.memory_space<vmem>>, vector<128x128xbf16>,
    return
  }
}

</mosaic_0001>

<llo_original>
// kernel: tpu_custom_call.1
$region0: #{tpu_custom_call.1}
  #allocation0 [shape = 'u32[]', space=smem, size = 0x4, offset = 0x4, fixed_abs, tag = 'smem constant byte address 0x4 - core index']
  #allocation1 [shape = 'u32[144,128]{1,0:T(1,128)}', space=vmem, size = 0x12000, scoped, tag = 'internal scratch']
  %s0 = inlined_call_operand.vmem [shape: f32[128,32], index: 0, kind: input, shape index: {}]
  %s1 = inlined_call_operand.vmem [shape: f32[128,128], index: 1, kind: input, shape index: {}]
  %s2 = inlined_call_operand.vmem [shape: f32[32,64], index: 2, kind: input, shape index: {}]
  %s3 = inlined_call_operand.hbm [shape: f32[64,128], index: 3, kind: input, shape index: {}]
  %s4 = inlined_call_operand.hbm [shape: bf16[128,128], index: 4, kind: output, shape index: {}]
  %s5 = sld [smem:[#allocation0]]
  $region30: #{tpu_custom_call.1} parent=0
    _
  %s7 = ssub.s32 1, %s5
  %s8 = scalar_select 0, %s7, %s5
  $region1: #{tpu_custom_call.1} parent=0
    #allocation2 [shape = 'u8[32768]{0}', space=vmem, size = 0x8000, scoped, tag = 'input window, operand 3, single buffered']
    #allocation3 [shape = 's32[1]{0}', space=sflag, size = 0x4, scoped, tag = 'scoped memory for tpu_custom_call.1']
    #allocation4 [shape = 's32[1]{0}', space=sflag, size = 0x4, scoped, tag = 'scoped memory for tpu_custom_call.1']
    #allocation5 [shape = 'u8[32768]{0}', space=vmem, size = 0x8000, scoped, tag = 'output window, operand 0, single buffered']
    %9 = vsyncpa [#allocation3], 0
    %10 = vsyncpa [#allocation4], 0
    // Predicated region
    $region2: #{tpu_custom_call.1} parent=1 // pred_check
      _
    $region3: #{tpu_custom_call.1} parent=1 // pred_check_branch
      %12 = sbr.rel (0) target = $region5
    $region4: #{tpu_custom_call.1} parent=1 // pred_region
      _
    $region5: #{tpu_custom_call.1} parent=1 // pred_fallthru
      _
    // Predicated region
    $region6: #{tpu_custom_call.1} parent=1 // pred_check
      _
    $region7: #{tpu_custom_call.1} parent=1 // pred_check_branch
      %14 = sbr.rel (0) target = $region9
    $region8: #{tpu_custom_call.1} parent=1 // pred_region
      _
    $region9: #{tpu_custom_call.1} parent=1 // pred_fallthru
      _
    // Predicated region
    $region10: #{tpu_custom_call.1} parent=1 // pred_check
      _
    $region11: #{tpu_custom_call.1} parent=1 // pred_check_branch
      %16 = sbr.rel (0) target = $region13
    $region12: #{tpu_custom_call.1} parent=1 // pred_region
      _
    $region13: #{tpu_custom_call.1} parent=1 // pred_fallthru
      _
    // Predicated region
    $region14: #{tpu_custom_call.1} parent=1 // pred_check
      _
    $region15: #{tpu_custom_call.1} parent=1 // pred_check_branch
      %18 = sbr.rel (0) target = $region17
    $region16: #{tpu_custom_call.1} parent=1 // pred_region
      %s20 = ssub.s32 1024, 1024
      %21 = vsyncadd [#allocation3], %s20
      %s22 = sshll.u32 [#allocation2], 4
      %s23 = int_to_ptr.vmem [resolvable:$true] %s22
      %28 = dma.hbm_to_vmem [thread:$0]  %s3, 1024, %s23, [#allocation3], 128, 128, 8
    $region17: #{tpu_custom_call.1} parent=1 // pred_fallthru
      _
    // Predicated region
    $region18: #{tpu_custom_call.1} parent=1 // pred_check
      _
    $region19: #{tpu_custom_call.1} parent=1 // pred_check_branch
      %30 = sbr.rel (0) target = $region21
    $region20: #{tpu_custom_call.1} parent=1 // pred_region
      %31 = dma.done [#allocation3], 1024
    $region21: #{tpu_custom_call.1} parent=1 // pred_fallthru
      _
    %v33 = vld [vmem:[%s0] sm:$0xff]
    %v34 = vld [vmem:[%s0 + $0x8] sm:$0xff]
    %v35 = vld [vmem:[%s0 + $0x10] sm:$0xff]
    %v36 = vld [vmem:[%s0 + $0x18] sm:$0xff]
    %v37 = vld [vmem:[%s0 + $0x20] sm:$0xff]
    %v38 = vld [vmem:[%s0 + $0x28] sm:$0xff]
    %v39 = vld [vmem:[%s0 + $0x30] sm:$0xff]
    %v40 = vld [vmem:[%s0 + $0x38] sm:$0xff]
    %v41 = vld [vmem:[%s0 + $0x40] sm:$0xff]
    %v42 = vld [vmem:[%s0 + $0x48] sm:$0xff]
    %v43 = vld [vmem:[%s0 + $0x50] sm:$0xff]
    %v44 = vld [vmem:[%s0 + $0x58] sm:$0xff]
    %v45 = vld [vmem:[%s0 + $0x60] sm:$0xff]
    %v46 = vld [vmem:[%s0 + $0x68] sm:$0xff]
    %v47 = vld [vmem:[%s0 + $0x70] sm:$0xff]
    %v48 = vld [vmem:[%s0 + $0x78] sm:$0xff]
    %v49 = vpack.c.bf16 %v34, %v33
    %v50 = vpack.c.bf16 %v36, %v35
    %v51 = vpack.c.bf16 %v38, %v37
    %v52 = vpack.c.bf16 %v40, %v39
    %v53 = vpack.c.bf16 %v42, %v41
    %v54 = vpack.c.bf16 %v44, %v43
    %v55 = vpack.c.bf16 %v46, %v45
    %v56 = vpack.c.bf16 %v48, %v47
    %v57 = vld [vmem:[%s1] sm:$0xff]
    %v58 = vld [vmem:[%s1 + $0x8] sm:$0xff]
    %v59 = vld [vmem:[%s1 + $0x10] sm:$0xff]
    %v60 = vld [vmem:[%s1 + $0x18] sm:$0xff]
    %v61 = vld [vmem:[%s1 + $0x20] sm:$0xff]
    %v62 = vld [vmem:[%s1 + $0x28] sm:$0xff]
    %v63 = vld [vmem:[%s1 + $0x30] sm:$0xff]
    %v64 = vld [vmem:[%s1 + $0x38] sm:$0xff]
    %v65 = vld [vmem:[%s1 + $0x40] sm:$0xff]
    %v66 = vld [vmem:[%s1 + $0x48] sm:$0xff]
    %v67 = vld [vmem:[%s1 + $0x50] sm:$0xff]
    %v68 = vld [vmem:[%s1 + $0x58] sm:$0xff]
    %v69 = vld [vmem:[%s1 + $0x60] sm:$0xff]
    %v70 = vld [vmem:[%s1 + $0x68] sm:$0xff]
    %v71 = vld [vmem:[%s1 + $0x70] sm:$0xff]
    %v72 = vld [vmem:[%s1 + $0x78] sm:$0xff]
    %v73 = vpack.c.bf16 %v58, %v57
    %v74 = vpack.c.bf16 %v60, %v59
    %v75 = vpack.c.bf16 %v62, %v61
    %v76 = vpack.c.bf16 %v64, %v63
    %v77 = vpack.c.bf16 %v66, %v65
    %v78 = vpack.c.bf16 %v68, %v67
    %v79 = vpack.c.bf16 %v70, %v69
    %v80 = vpack.c.bf16 %v72, %v71
    %v81 = vld [vmem:[%s2] sm:$0xff]
    %v82 = vld [vmem:[%s2 + $0x8] sm:$0xff]
    %v83 = vld [vmem:[%s2 + $0x10] sm:$0xff]
    %v84 = vld [vmem:[%s2 + $0x18] sm:$0xff]
    %v85 = vpack.c.bf16 %v82, %v81
    %v86 = vpack.c.bf16 %v84, %v83
    %vm87 = vcmask 261120
    %v89 = vsel %vm87, %v49, 0
    %v92 = vsel %vm87, %v50, 0
    %v95 = vsel %vm87, %v51, 0
    %v98 = vsel %vm87, %v52, 0
    %v101 = vsel %vm87, %v53, 0
    %v104 = vsel %vm87, %v54, 0
    %v107 = vsel %vm87, %v55, 0
    %v110 = vsel %vm87, %v56, 0
    %112 = vmatprep.subr.bf16.mxu0 0
    %113 = vmatpush1.bf16.msra.mxu0 %v85
    %114 = vmatprep.subr.bf16.mxu0 0
    %115 = vmatpush1.bf16.msra.mxu0 %v86
    %116 = vmatprep.subr.bf16.mxu0 0
    %117 = vmatpush1.bf16.msra.mxu0 0
    %118 = vmatprep.subr.bf16.mxu0 0
    %119 = vmatpush1.bf16.msra.mxu0 0
    %120 = vmatprep.subr.bf16.mxu0 0
    %121 = vmatpush1.bf16.msra.mxu0 0
    %122 = vmatprep.subr.bf16.mxu0 0
    %123 = vmatpush1.bf16.msra.mxu0 0
    %124 = vmatprep.subr.bf16.mxu0 0
    %125 = vmatpush1.bf16.msra.mxu0 0
    %126 = vmatprep.subr.bf16.mxu0 0
    %127 = vmatpush1.bf16.msra.mxu0 0
    %128 = vmatprep.subr.bf16.mxu0 0
    %129 = vmatpush1.bf16.msra.mxu0 0
    %130 = vmatprep.subr.bf16.mxu0 0
    %131 = vmatpush1.bf16.msra.mxu0 0
    %132 = vmatprep.subr.bf16.mxu0 0
    %133 = vmatpush1.bf16.msra.mxu0 0
    %134 = vmatprep.subr.bf16.mxu0 0
    %135 = vmatpush1.bf16.msra.mxu0 0
    %136 = vmatprep.subr.bf16.mxu0 0
    %137 = vmatpush1.bf16.msra.mxu0 0
    %138 = vmatprep.subr.bf16.mxu0 0
    %139 = vmatpush1.bf16.msra.mxu0 0
    %140 = vmatprep.subr.bf16.mxu0 0
    %141 = vmatpush1.bf16.msra.mxu0 0
    %142 = vmatprep.subr.bf16.mxu0 0
    %143 = vmatpush1.bf16.msra.mxu0 0
    %144 = vmatprep.mubr.bf16.mxu0 0
    %145 = vmatmul.mubr.bf16.gmra.mrb[0].mxu0 %v89
    %v146 = vpop.f32.mrb[0].mxu0
    %v147 = vadd.f32 0.0, %v146
    %v148 = vpop.f32.mrb[0].mxu0
    %v149 = vpop.f32.mrb[0].mxu0
    %v150 = vadd.f32 0.0, %v149
    %v151 = vpop.f32.mrb[0].mxu0
    %152 = vmatprep.mubr.bf16.mxu0 0
    %153 = vmatmul.mubr.bf16.gmra.mrb[0].mxu0 %v92
    %v154 = vpop.f32.mrb[0].mxu0
    %v155 = vadd.f32 0.0, %v154
    %v156 = vpop.f32.mrb[0].mxu0
    %v157 = vpop.f32.mrb[0].mxu0
    %v158 = vadd.f32 0.0, %v157
    %v159 = vpop.f32.mrb[0].mxu0
    %160 = vmatprep.mubr.bf16.mxu0 0
    %161 = vmatmul.mubr.bf16.gmra.mrb[0].mxu0 %v95
    %v162 = vpop.f32.mrb[0].mxu0
    %v163 = vadd.f32 0.0, %v162
    %v164 = vpop.f32.mrb[0].mxu0
    %v165 = vpop.f32.mrb[0].mxu0
    %v166 = vadd.f32 0.0, %v165
    %v167 = vpop.f32.mrb[0].mxu0
    %168 = vmatprep.mubr.bf16.mxu0 0
    %169 = vmatmul.mubr.bf16.gmra.mrb[0].mxu0 %v98
    %v170 = vpop.f32.mrb[0].mxu0
    %v171 = vadd.f32 0.0, %v170
    %v172 = vpop.f32.mrb[0].mxu0
    %v173 = vpop.f32.mrb[0].mxu0
    %v174 = vadd.f32 0.0, %v173
    %v175 = vpop.f32.mrb[0].mxu0
    %176 = vmatprep.mubr.bf16.mxu0 0
    %177 = vmatmul.mubr.bf16.gmra.mrb[0].mxu0 %v101
    %v178 = vpop.f32.mrb[0].mxu0
    %v179 = vadd.f32 0.0, %v178
    %v180 = vpop.f32.mrb[0].mxu0
    %v181 = vpop.f32.mrb[0].mxu0
    %v182 = vadd.f32 0.0, %v181
    %v183 = vpop.f32.mrb[0].mxu0
    %184 = vmatprep.mubr.bf16.mxu0 0
    %185 = vmatmul.mubr.bf16.gmra.mrb[0].mxu0 %v104
    %v186 = vpop.f32.mrb[0].mxu0
    %v187 = vadd.f32 0.0, %v186
    %v188 = vpop.f32.mrb[0].mxu0
    %v189 = vpop.f32.mrb[0].mxu0
    %v190 = vadd.f32 0.0, %v189
    %v191 = vpop.f32.mrb[0].mxu0
    %192 = vmatprep.mubr.bf16.mxu0 0
    %193 = vmatmul.mubr.bf16.gmra.mrb[0].mxu0 %v107
    %v194 = vpop.f32.mrb[0].mxu0
    %v195 = vadd.f32 0.0, %v194
    %v196 = vpop.f32.mrb[0].mxu0
    %v197 = vpop.f32.mrb[0].mxu0
    %v198 = vadd.f32 0.0, %v197
    %v199 = vpop.f32.mrb[0].mxu0
    %200 = vmatprep.mubr.bf16.mxu0 0
    %201 = vmatmul.mubr.bf16.gmra.mrb[0].mxu0 %v110
    %v202 = vpop.f32.mrb[0].mxu0
    %v203 = vadd.f32 0.0, %v202
    %v204 = vpop.f32.mrb[0].mxu0
    %v205 = vpop.f32.mrb[0].mxu0
    %v206 = vadd.f32 0.0, %v205
    %v207 = vpop.f32.mrb[0].mxu0
    %208 = vdwg.mxu0
    %v209 = vpack.c.bf16 %v150, %v147
    %v210 = vpack.c.bf16 %v158, %v155
    %v211 = vpack.c.bf16 %v166, %v163
    %v212 = vpack.c.bf16 %v174, %v171
    %v213 = vpack.c.bf16 %v182, %v179
    %v214 = vpack.c.bf16 %v190, %v187
    %v215 = vpack.c.bf16 %v198, %v195
    %v216 = vpack.c.bf16 %v206, %v203
    %217 = vmatprep.subr.bf16.mxu0 0
    %218 = vmatpush1.bf16.msra.mxu0 %v209
    %219 = vmatprep.subr.bf16.mxu0 0
    %220 = vmatpush1.bf16.msra.mxu0 %v210
    %221 = vmatprep.subr.bf16.mxu0 0
    %222 = vmatpush1.bf16.msra.mxu0 %v211
    %223 = vmatprep.subr.bf16.mxu0 0
    %224 = vmatpush1.bf16.msra.mxu0 %v212
    %225 = vmatprep.subr.bf16.mxu0 0
    %226 = vmatpush1.bf16.msra.mxu0 %v213
    %227 = vmatprep.subr.bf16.mxu0 0
    %228 = vmatpush1.bf16.msra.mxu0 %v214
    %229 = vmatprep.subr.bf16.mxu0 0
    %230 = vmatpush1.bf16.msra.mxu0 %v215
    %231 = vmatprep.subr.bf16.mxu0 0
    %232 = vmatpush1.bf16.msra.mxu0 %v216
    %233 = vmatprep.subr.bf16.mxu0 0
    %234 = vmatpush1.bf16.msra.mxu0 0
    %235 = vmatprep.subr.bf16.mxu0 0
    %236 = vmatpush1.bf16.msra.mxu0 0
    %237 = vmatprep.subr.bf16.mxu0 0
    %238 = vmatpush1.bf16.msra.mxu0 0
    %239 = vmatprep.subr.bf16.mxu0 0
    %240 = vmatpush1.bf16.msra.mxu0 0
    %241 = vmatprep.subr.bf16.mxu0 0
    %242 = vmatpush1.bf16.msra.mxu0 0
    %243 = vmatprep.subr.bf16.mxu0 0
    %244 = vmatpush1.bf16.msra.mxu0 0
    %245 = vmatprep.subr.bf16.mxu0 0
    %246 = vmatpush1.bf16.msra.mxu0 0
    %247 = vmatprep.subr.bf16.mxu0 0
    %248 = vmatpush1.bf16.msra.mxu0 0
    %249 = vmatprep.mubr.bf16.mxu0 0
    %250 = vmatmul.mubr.bf16.gmra.mrb[0].mxu0 %v73
    %v251 = vpop.f32.mrb[0].mxu0
    %v252 = vadd.f32 0.0, %v251
    %v253 = vpop.f32.mrb[0].mxu0
    %v254 = vpop.f32.mrb[0].mxu0
    %v255 = vadd.f32 0.0, %v254
    %v256 = vpop.f32.mrb[0].mxu0
    %257 = vmatprep.mubr.bf16.mxu0 0
    %258 = vmatmul.mubr.bf16.gmra.mrb[0].mxu0 %v74
    %v259 = vpop.f32.mrb[0].mxu0
    %v260 = vadd.f32 0.0, %v259
    %v261 = vpop.f32.mrb[0].mxu0
    %v262 = vpop.f32.mrb[0].mxu0
    %v263 = vadd.f32 0.0, %v262
    %v264 = vpop.f32.mrb[0].mxu0
    %265 = vmatprep.mubr.bf16.mxu0 0
    %266 = vmatmul.mubr.bf16.gmra.mrb[0].mxu0 %v75
    %v267 = vpop.f32.mrb[0].mxu0
    %v268 = vadd.f32 0.0, %v267
    %v269 = vpop.f32.mrb[0].mxu0
    %v270 = vpop.f32.mrb[0].mxu0
    %v271 = vadd.f32 0.0, %v270
    %v272 = vpop.f32.mrb[0].mxu0
    %273 = vmatprep.mubr.bf16.mxu0 0
    %274 = vmatmul.mubr.bf16.gmra.mrb[0].mxu0 %v76
    %v275 = vpop.f32.mrb[0].mxu0
    %v276 = vadd.f32 0.0, %v275
    %v277 = vpop.f32.mrb[0].mxu0
    %v278 = vpop.f32.mrb[0].mxu0
    %v279 = vadd.f32 0.0, %v278
    %v280 = vpop.f32.mrb[0].mxu0
    %281 = vmatprep.mubr.bf16.mxu0 0
    %282 = vmatmul.mubr.bf16.gmra.mrb[0].mxu0 %v77
    %v283 = vpop.f32.mrb[0].mxu0
    %v284 = vadd.f32 0.0, %v283
    %v285 = vpop.f32.mrb[0].mxu0
    %v286 = vpop.f32.mrb[0].mxu0
    %v287 = vadd.f32 0.0, %v286
    %v288 = vpop.f32.mrb[0].mxu0
    %289 = vmatprep.mubr.bf16.mxu0 0
    %290 = vmatmul.mubr.bf16.gmra.mrb[0].mxu0 %v78
    %v291 = vpop.f32.mrb[0].mxu0
    %v292 = vadd.f32 0.0, %v291
    %v293 = vpop.f32.mrb[0].mxu0
    %v294 = vpop.f32.mrb[0].mxu0
    %v295 = vadd.f32 0.0, %v294
    %v296 = vpop.f32.mrb[0].mxu0
    %297 = vmatprep.mubr.bf16.mxu0 0
    %298 = vmatmul.mubr.bf16.gmra.mrb[0].mxu0 %v79
    %v299 = vpop.f32.mrb[0].mxu0
    %v300 = vadd.f32 0.0, %v299
    %v301 = vpop.f32.mrb[0].mxu0
    %v302 = vpop.f32.mrb[0].mxu0
    %v303 = vadd.f32 0.0, %v302
    %v304 = vpop.f32.mrb[0].mxu0
    %305 = vmatprep.mubr.bf16.mxu0 0
    %306 = vmatmul.mubr.bf16.gmra.mrb[0].mxu0 %v80
    %v307 = vpop.f32.mrb[0].mxu0
    %v308 = vadd.f32 0.0, %v307
    %v309 = vpop.f32.mrb[0].mxu0
    %v310 = vpop.f32.mrb[0].mxu0
    %v311 = vadd.f32 0.0, %v310
    %v312 = vpop.f32.mrb[0].mxu0
    %313 = vdwg.mxu0
    %vm314 = vcmp.gt.f32.partialorder %v252, 0.0
    %vm315 = vcmp.gt.f32.partialorder %v255, 0.0
    %vm316 = vcmp.gt.f32.partialorder %v260, 0.0
    %vm317 = vcmp.gt.f32.partialorder %v263, 0.0
    %vm318 = vcmp.gt.f32.partialorder %v268, 0.0
    %vm319 = vcmp.gt.f32.partialorder %v271, 0.0
    %vm320 = vcmp.gt.f32.partialorder %v276, 0.0
    %vm321 = vcmp.gt.f32.partialorder %v279, 0.0
    %vm322 = vcmp.gt.f32.partialorder %v284, 0.0
    %vm323 = vcmp.gt.f32.partialorder %v287, 0.0
    %vm324 = vcmp.gt.f32.partialorder %v292, 0.0
    %vm325 = vcmp.gt.f32.partialorder %v295, 0.0
    %vm326 = vcmp.gt.f32.partialorder %v300, 0.0
    %vm327 = vcmp.gt.f32.partialorder %v303, 0.0
    %vm328 = vcmp.gt.f32.partialorder %v308, 0.0
    %vm329 = vcmp.gt.f32.partialorder %v311, 0.0
    %v330 = vmul.f32 %v252, 0.2
    %v331 = vmul.f32 %v255, 0.2
    %v332 = vmul.f32 %v260, 0.2
    %v333 = vmul.f32 %v263, 0.2
    %v334 = vmul.f32 %v268, 0.2
    %v335 = vmul.f32 %v271, 0.2
    %v336 = vmul.f32 %v276, 0.2
    %v337 = vmul.f32 %v279, 0.2
    %v338 = vmul.f32 %v284, 0.2
    %v339 = vmul.f32 %v287, 0.2
    %v340 = vmul.f32 %v292, 0.2
    %v341 = vmul.f32 %v295, 0.2
    %v342 = vmul.f32 %v300, 0.2
    %v343 = vmul.f32 %v303, 0.2
    %v344 = vmul.f32 %v308, 0.2
    %v345 = vmul.f32 %v311, 0.2
    %v346 = vsel %vm314, %v252, %v330
    %v347 = vsel %vm315, %v255, %v331
    %v348 = vsel %vm316, %v260, %v332
    %v349 = vsel %vm317, %v263, %v333
    %v350 = vsel %vm318, %v268, %v334
    %v351 = vsel %vm319, %v271, %v335
    %v352 = vsel %vm320, %v276, %v336
    %v353 = vsel %vm321, %v279, %v337
    %v354 = vsel %vm322, %v284, %v338
    %v355 = vsel %vm323, %v287, %v339
    %v356 = vsel %vm324, %v292, %v340
    %v357 = vsel %vm325, %v295, %v341
    %v358 = vsel %vm326, %v300, %v342
    %v359 = vsel %vm327, %v303, %v343
    %v360 = vsel %vm328, %v308, %v344
    %v361 = vsel %vm329, %v311, %v345
    %v362 = vpack.c.bf16 %v347, %v346
    %v363 = vpack.c.bf16 %v349, %v348
    %v364 = vpack.c.bf16 %v351, %v350
    %v365 = vpack.c.bf16 %v353, %v352
    %v366 = vpack.c.bf16 %v355, %v354
    %v367 = vpack.c.bf16 %v357, %v356
    %v368 = vpack.c.bf16 %v359, %v358
    %v369 = vpack.c.bf16 %v361, %v360
    %v370 = vld [vmem:[#allocation2] sm:$0xff]
    %v371 = vld [vmem:[#allocation2 + $0x8] sm:$0xff]
    %v372 = vld [vmem:[#allocation2 + $0x10] sm:$0xff]
    %v373 = vld [vmem:[#allocation2 + $0x18] sm:$0xff]
    %v374 = vld [vmem:[#allocation2 + $0x20] sm:$0xff]
    %v375 = vld [vmem:[#allocation2 + $0x28] sm:$0xff]
    %v376 = vld [vmem:[#allocation2 + $0x30] sm:$0xff]
    %v377 = vld [vmem:[#allocation2 + $0x38] sm:$0xff]
    %v378 = vpack.c.bf16 %v371, %v370
    %v379 = vpack.c.bf16 %v373, %v372
    %v380 = vpack.c.bf16 %v375, %v374
    %v381 = vpack.c.bf16 %v377, %v376
    %vm382 = vcmask 523264
    %v384 = vsel %vm382, %v362, 0
    %v387 = vsel %vm382, %v363, 0
    %v390 = vsel %vm382, %v364, 0
    %v393 = vsel %vm382, %v365, 0
    %v396 = vsel %vm382, %v366, 0
    %v399 = vsel %vm382, %v367, 0
    %v402 = vsel %vm382, %v368, 0
    %v405 = vsel %vm382, %v369, 0
    %407 = vmatprep.subr.bf16.mxu0 0
    %408 = vmatpush1.bf16.msra.mxu0 %v378
    %409 = vmatprep.subr.bf16.mxu0 0
    %410 = vmatpush1.bf16.msra.mxu0 %v379
    %411 = vmatprep.subr.bf16.mxu0 0
    %412 = vmatpush1.bf16.msra.mxu0 %v380
    %413 = vmatprep.subr.bf16.mxu0 0
    %414 = vmatpush1.bf16.msra.mxu0 %v381
    %415 = vmatprep.subr.bf16.mxu0 0
    %416 = vmatpush1.bf16.msra.mxu0 0
    %417 = vmatprep.subr.bf16.mxu0 0
    %418 = vmatpush1.bf16.msra.mxu0 0
    %419 = vmatprep.subr.bf16.mxu0 0
    %420 = vmatpush1.bf16.msra.mxu0 0
    %421 = vmatprep.subr.bf16.mxu0 0
    %422 = vmatpush1.bf16.msra.mxu0 0
    %423 = vmatprep.subr.bf16.mxu0 0
    %424 = vmatpush1.bf16.msra.mxu0 0
    %425 = vmatprep.subr.bf16.mxu0 0
    %426 = vmatpush1.bf16.msra.mxu0 0
    %427 = vmatprep.subr.bf16.mxu0 0
    %428 = vmatpush1.bf16.msra.mxu0 0
    %429 = vmatprep.subr.bf16.mxu0 0
    %430 = vmatpush1.bf16.msra.mxu0 0
    %431 = vmatprep.subr.bf16.mxu0 0
    %432 = vmatpush1.bf16.msra.mxu0 0
    %433 = vmatprep.subr.bf16.mxu0 0
    %434 = vmatpush1.bf16.msra.mxu0 0
    %435 = vmatprep.subr.bf16.mxu0 0
    %436 = vmatpush1.bf16.msra.mxu0 0
    %437 = vmatprep.subr.bf16.mxu0 0
    %438 = vmatpush1.bf16.msra.mxu0 0
    %439 = vmatprep.mubr.bf16.mxu0 0
    %440 = vmatmul.mubr.bf16.gmra.mrb[0].mxu0 %v384
    %v441 = vpop.f32.mrb[0].mxu0
    %v442 = vadd.f32 0.0, %v441
    %v443 = vpop.f32.mrb[0].mxu0
    %v444 = vpop.f32.mrb[0].mxu0
    %v445 = vadd.f32 0.0, %v444
    %v446 = vpop.f32.mrb[0].mxu0
    %447 = vmatprep.mubr.bf16.mxu0 0
    %448 = vmatmul.mubr.bf16.gmra.mrb[0].mxu0 %v387
    %v449 = vpop.f32.mrb[0].mxu0
    %v450 = vadd.f32 0.0, %v449
    %v451 = vpop.f32.mrb[0].mxu0
    %v452 = vpop.f32.mrb[0].mxu0
    %v453 = vadd.f32 0.0, %v452
    %v454 = vpop.f32.mrb[0].mxu0
    %455 = vmatprep.mubr.bf16.mxu0 0
    %456 = vmatmul.mubr.bf16.gmra.mrb[0].mxu0 %v390
    %v457 = vpop.f32.mrb[0].mxu0
    %v458 = vadd.f32 0.0, %v457
    %v459 = vpop.f32.mrb[0].mxu0
    %v460 = vpop.f32.mrb[0].mxu0
    %v461 = vadd.f32 0.0, %v460
    %v462 = vpop.f32.mrb[0].mxu0
    %463 = vmatprep.mubr.bf16.mxu0 0
    %464 = vmatmul.mubr.bf16.gmra.mrb[0].mxu0 %v393
    %v465 = vpop.f32.mrb[0].mxu0
    %v466 = vadd.f32 0.0, %v465
    %v467 = vpop.f32.mrb[0].mxu0
    %v468 = vpop.f32.mrb[0].mxu0
    %v469 = vadd.f32 0.0, %v468
    %v470 = vpop.f32.mrb[0].mxu0
    %471 = vmatprep.mubr.bf16.mxu0 0
    %472 = vmatmul.mubr.bf16.gmra.mrb[0].mxu0 %v396
    %v473 = vpop.f32.mrb[0].mxu0
    %v474 = vadd.f32 0.0, %v473
    %v475 = vpop.f32.mrb[0].mxu0
    %v476 = vpop.f32.mrb[0].mxu0
    %v477 = vadd.f32 0.0, %v476
    %v478 = vpop.f32.mrb[0].mxu0
    %479 = vmatprep.mubr.bf16.mxu0 0
    %480 = vmatmul.mubr.bf16.gmra.mrb[0].mxu0 %v399
    %v481 = vpop.f32.mrb[0].mxu0
    %v482 = vadd.f32 0.0, %v481
    %v483 = vpop.f32.mrb[0].mxu0
    %v484 = vpop.f32.mrb[0].mxu0
    %v485 = vadd.f32 0.0, %v484
    %v486 = vpop.f32.mrb[0].mxu0
    %487 = vmatprep.mubr.bf16.mxu0 0
    %488 = vmatmul.mubr.bf16.gmra.mrb[0].mxu0 %v402
    %v489 = vpop.f32.mrb[0].mxu0
    %v490 = vadd.f32 0.0, %v489
    %v491 = vpop.f32.mrb[0].mxu0
    %v492 = vpop.f32.mrb[0].mxu0
    %v493 = vadd.f32 0.0, %v492
    %v494 = vpop.f32.mrb[0].mxu0
    %495 = vmatprep.mubr.bf16.mxu0 0
    %496 = vmatmul.mubr.bf16.gmra.mrb[0].mxu0 %v405
    %v497 = vpop.f32.mrb[0].mxu0
    %v498 = vadd.f32 0.0, %v497
    %v499 = vpop.f32.mrb[0].mxu0
    %v500 = vpop.f32.mrb[0].mxu0
    %v501 = vadd.f32 0.0, %v500
    %v502 = vpop.f32.mrb[0].mxu0
    %503 = vdwg.mxu0
    %v504 = vpack.c.bf16 %v445, %v442
    %v505 = vpack.c.bf16 %v453, %v450
    %v506 = vpack.c.bf16 %v461, %v458
    %v507 = vpack.c.bf16 %v469, %v466
    %v508 = vpack.c.bf16 %v477, %v474
    %v509 = vpack.c.bf16 %v485, %v482
    %v510 = vpack.c.bf16 %v493, %v490
    %v511 = vpack.c.bf16 %v501, %v498
    %512 = vmatprep.subr.bf16.mxu0 0
    %513 = vmatpush1.bf16.msra.mxu0 %v504
    %514 = vmatprep.subr.bf16.mxu0 0
    %515 = vmatpush1.bf16.msra.mxu0 %v505
    %516 = vmatprep.subr.bf16.mxu0 0
    %517 = vmatpush1.bf16.msra.mxu0 %v506
    %518 = vmatprep.subr.bf16.mxu0 0
    %519 = vmatpush1.bf16.msra.mxu0 %v507
    %520 = vmatprep.subr.bf16.mxu0 0
    %521 = vmatpush1.bf16.msra.mxu0 %v508
    %522 = vmatprep.subr.bf16.mxu0 0
    %523 = vmatpush1.bf16.msra.mxu0 %v509
    %524 = vmatprep.subr.bf16.mxu0 0
    %525 = vmatpush1.bf16.msra.mxu0 %v510
    %526 = vmatprep.subr.bf16.mxu0 0
    %527 = vmatpush1.bf16.msra.mxu0 %v511
    %528 = vmatprep.subr.bf16.mxu0 0
    %529 = vmatpush1.bf16.msra.mxu0 0
    %530 = vmatprep.subr.bf16.mxu0 0
    %531 = vmatpush1.bf16.msra.mxu0 0
    %532 = vmatprep.subr.bf16.mxu0 0
    %533 = vmatpush1.bf16.msra.mxu0 0
    %534 = vmatprep.subr.bf16.mxu0 0
    %535 = vmatpush1.bf16.msra.mxu0 0
    %536 = vmatprep.subr.bf16.mxu0 0
    %537 = vmatpush1.bf16.msra.mxu0 0
    %538 = vmatprep.subr.bf16.mxu0 0
    %539 = vmatpush1.bf16.msra.mxu0 0
    %540 = vmatprep.subr.bf16.mxu0 0
    %541 = vmatpush1.bf16.msra.mxu0 0
    %542 = vmatprep.subr.bf16.mxu0 0
    %543 = vmatpush1.bf16.msra.mxu0 0
    %544 = vmatprep.mubr.bf16.mxu0 0
    %545 = vmatmul.mubr.bf16.gmra.mrb[0].mxu0 %v73
    %v546 = vpop.f32.mrb[0].mxu0
    %v547 = vadd.f32 0.0, %v546
    %v548 = vpop.f32.mrb[0].mxu0
    %v549 = vpop.f32.mrb[0].mxu0
    %v550 = vadd.f32 0.0, %v549
    %v551 = vpop.f32.mrb[0].mxu0
    %552 = vmatprep.mubr.bf16.mxu0 0
    %553 = vmatmul.mubr.bf16.gmra.mrb[0].mxu0 %v74
    %v554 = vpop.f32.mrb[0].mxu0
    %v555 = vadd.f32 0.0, %v554
    %v556 = vpop.f32.mrb[0].mxu0
    %v557 = vpop.f32.mrb[0].mxu0
    %v558 = vadd.f32 0.0, %v557
    %v559 = vpop.f32.mrb[0].mxu0
    %560 = vmatprep.mubr.bf16.mxu0 0
    %561 = vmatmul.mubr.bf16.gmra.mrb[0].mxu0 %v75
    %v562 = vpop.f32.mrb[0].mxu0
    %v563 = vadd.f32 0.0, %v562
    %v564 = vpop.f32.mrb[0].mxu0
    %v565 = vpop.f32.mrb[0].mxu0
    %v566 = vadd.f32 0.0, %v565
    %v567 = vpop.f32.mrb[0].mxu0
    %568 = vmatprep.mubr.bf16.mxu0 0
    %569 = vmatmul.mubr.bf16.gmra.mrb[0].mxu0 %v76
    %v570 = vpop.f32.mrb[0].mxu0
    %v571 = vadd.f32 0.0, %v570
    %v572 = vpop.f32.mrb[0].mxu0
    %v573 = vpop.f32.mrb[0].mxu0
    %v574 = vadd.f32 0.0, %v573
    %v575 = vpop.f32.mrb[0].mxu0
    %576 = vmatprep.mubr.bf16.mxu0 0
    %577 = vmatmul.mubr.bf16.gmra.mrb[0].mxu0 %v77
    %v578 = vpop.f32.mrb[0].mxu0
    %v579 = vadd.f32 0.0, %v578
    %v580 = vpop.f32.mrb[0].mxu0
    %v581 = vpop.f32.mrb[0].mxu0
    %v582 = vadd.f32 0.0, %v581
    %v583 = vpop.f32.mrb[0].mxu0
    %584 = vmatprep.mubr.bf16.mxu0 0
    %585 = vmatmul.mubr.bf16.gmra.mrb[0].mxu0 %v78
    %v586 = vpop.f32.mrb[0].mxu0
    %v587 = vadd.f32 0.0, %v586
    %v588 = vpop.f32.mrb[0].mxu0
    %v589 = vpop.f32.mrb[0].mxu0
    %v590 = vadd.f32 0.0, %v589
    %v591 = vpop.f32.mrb[0].mxu0
    %592 = vmatprep.mubr.bf16.mxu0 0
    %593 = vmatmul.mubr.bf16.gmra.mrb[0].mxu0 %v79
    %v594 = vpop.f32.mrb[0].mxu0
    %v595 = vadd.f32 0.0, %v594
    %v596 = vpop.f32.mrb[0].mxu0
    %v597 = vpop.f32.mrb[0].mxu0
    %v598 = vadd.f32 0.0, %v597
    %v599 = vpop.f32.mrb[0].mxu0
    %600 = vmatprep.mubr.bf16.mxu0 0
    %601 = vmatmul.mubr.bf16.gmra.mrb[0].mxu0 %v80
    %v602 = vpop.f32.mrb[0].mxu0
    %v603 = vadd.f32 0.0, %v602
    %v604 = vpop.f32.mrb[0].mxu0
    %v605 = vpop.f32.mrb[0].mxu0
    %v606 = vadd.f32 0.0, %v605
    %v607 = vpop.f32.mrb[0].mxu0
    %608 = vdwg.mxu0
    %v609 = vpack.c.bf16 %v550, %v547
    %v610 = vpack.c.bf16 %v558, %v555
    %v611 = vpack.c.bf16 %v566, %v563
    %v612 = vpack.c.bf16 %v574, %v571
    %v613 = vpack.c.bf16 %v582, %v579
    %v614 = vpack.c.bf16 %v590, %v587
    %v615 = vpack.c.bf16 %v598, %v595
    %v616 = vpack.c.bf16 %v606, %v603
    %v625 = vunpack.c.l.b16 %v609
    %v626 = vunpack.c.h.b16 %v609
    %v627 = vunpack.c.l.b16 %v610
    %v628 = vunpack.c.h.b16 %v610
    %v629 = vunpack.c.l.b16 %v611
    %v630 = vunpack.c.h.b16 %v611
    %v631 = vunpack.c.l.b16 %v612
    %v632 = vunpack.c.h.b16 %v612
    %v633 = vunpack.c.l.b16 %v613
    %v634 = vunpack.c.h.b16 %v613
    %v635 = vunpack.c.l.b16 %v614
    %v636 = vunpack.c.h.b16 %v614
    %v637 = vunpack.c.l.b16 %v615
    %v638 = vunpack.c.h.b16 %v615
    %v639 = vunpack.c.l.b16 %v616
    %v640 = vunpack.c.h.b16 %v616
    %v641 = vpack.c.b16 %v625, %v625
    %v642 = vpack.c.b16 %v626, %v626
    %v643 = vpack.c.b16 %v627, %v627
    %v644 = vpack.c.b16 %v628, %v628
    %v645 = vpack.c.b16 %v629, %v629
    %v646 = vpack.c.b16 %v630, %v630
    %v647 = vpack.c.b16 %v631, %v631
    %v648 = vpack.c.b16 %v632, %v632
    %v649 = vpack.c.b16 %v633, %v633
    %v650 = vpack.c.b16 %v634, %v634
    %v651 = vpack.c.b16 %v635, %v635
    %v652 = vpack.c.b16 %v636, %v636
    %v653 = vpack.c.b16 %v637, %v637
    %v654 = vpack.c.b16 %v638, %v638
    %v655 = vpack.c.b16 %v639, %v639
    %v656 = vpack.c.b16 %v640, %v640
    %673 = vst [vmem:[#allocation5] sm:$0xf] %v641
    %674 = vst [vmem:[#allocation5 + $0x4] sm:$0xf] %v642
    %675 = vst [vmem:[#allocation5 + $0x8] sm:$0xf] %v643
    %676 = vst [vmem:[#allocation5 + $0xc] sm:$0xf] %v644
    %677 = vst [vmem:[#allocation5 + $0x10] sm:$0xf] %v645
    %678 = vst [vmem:[#allocation5 + $0x14] sm:$0xf] %v646
    %679 = vst [vmem:[#allocation5 + $0x18] sm:$0xf] %v647
    %680 = vst [vmem:[#allocation5 + $0x1c] sm:$0xf] %v648
    %681 = vst [vmem:[#allocation5 + $0x20] sm:$0xf] %v649
    %682 = vst [vmem:[#allocation5 + $0x24] sm:$0xf] %v650
    %683 = vst [vmem:[#allocation5 + $0x28] sm:$0xf] %v651
    %684 = vst [vmem:[#allocation5 + $0x2c] sm:$0xf] %v652
    %685 = vst [vmem:[#allocation5 + $0x30] sm:$0xf] %v653
    %686 = vst [vmem:[#allocation5 + $0x34] sm:$0xf] %v654
    %687 = vst [vmem:[#allocation5 + $0x38] sm:$0xf] %v655
    %688 = vst [vmem:[#allocation5 + $0x3c] sm:$0xf] %v656
    // Predicated region
    $region22: #{tpu_custom_call.1} parent=1 // pred_check
      _
    $region23: #{tpu_custom_call.1} parent=1 // pred_check_branch
      %690 = sbr.rel (0) target = $region25
    $region24: #{tpu_custom_call.1} parent=1 // pred_region
      %s692 = ssub.s32 1024, 1024
      %693 = vsyncadd [#allocation4], %s692
      %s694 = sshll.u32 [#allocation5], 4
      %s695 = int_to_ptr.vmem [resolvable:$true] %s694
      %700 = dma.vmem_to_hbm [thread:$0]  %s695, 1024, %s4, [#allocation4], 64, 64, 4
    $region25: #{tpu_custom_call.1} parent=1 // pred_fallthru
      _
    // Predicated region
    $region26: #{tpu_custom_call.1} parent=1 // pred_check
      _
    $region27: #{tpu_custom_call.1} parent=1 // pred_check_branch
      %702 = sbr.rel (0) target = $region29
    $region28: #{tpu_custom_call.1} parent=1 // pred_region
      %703 = dma.done [#allocation4], 1024
    $region29: #{tpu_custom_call.1} parent=1 // pred_fallthru
      _
    %704 = vsyncpa [#allocation3], 1
    %705 = vsyncpa [#allocation4], 1

</llo_original>
